<compile_context>
chip_gen: v7x
topology: tpu7x:2x2x1
jax: 0.10.0
libtpu: 0.0.40
codegen_flags: <defaults>
</compile_context>

<pallas_src>
import jax
import jax.numpy as jnp
from jax.experimental import pallas as pl
from jax.experimental.pallas import tpu as pltpu


# ----------------------------- Pallas kernel ------------------------------- #
def _scorenet_kernel(xT_ref, llT_ref, w1xT_ref, w1lT_ref, b1T_ref,
                     w2T_ref, b2T_ref, w3T_ref, b3T_ref, o_ref):
    """One lane-tile in batch-on-lanes layout: activations are (features, TB)."""
    xb = xT_ref[...].astype(jnp.bfloat16)                  # (dim_in, TB) bf16 MXU operand
    ll = llT_ref[...]                                      # (1, TB) f32

    # Layer 1 with the log_lambda concat fused:
    #   W1^T @ [x; ll] + b1 == W1x^T @ x + w1l^T * ll + b1   (rank-1 term on VPU, f32)
    z1 = (jnp.dot(w1xT_ref[...], xb, preferred_element_type=jnp.float32)
          + w1lT_ref[...] * ll
          + b1T_ref[...])
    a1 = (z1 * jax.nn.sigmoid(z1)).astype(jnp.bfloat16)    # SiLU in f32, bf16 into next dot

    z2 = jnp.dot(w2T_ref[...], a1, preferred_element_type=jnp.float32) + b2T_ref[...]
    a2 = (z2 * jax.nn.sigmoid(z2)).astype(jnp.bfloat16)

    z3 = jnp.dot(w3T_ref[...], a2, preferred_element_type=jnp.float32) + b3T_ref[...]
    o_ref[...] = z3.astype(o_ref.dtype)                    # (dim_out, TB), lane-dense store


# ------------------------------ host wrapper -------------------------------- #
def _pick_tile(n, tile_b):
    """Lane-tile size: resident block when tiny, >=2 blocks for v7x's 2 TCs, capped tiles."""
    if n <= 512:
        return n                                            # full-dim block, grid=(1,)
    cap = max(128, (tile_b // 128) * 128)                   # lane-aligned cap
    if n <= cap:
        half = pl.cdiv(n, 2)                                # >=2 parallel steps on v7x
        return min(cap, pl.cdiv(half, 128) * 128)
    return cap


def scorenet_forward(x, log_lambda, params, *, tile_b=8192):
    """x: (..., dim_in); log_lambda broadcastable to x[..., :1]. Returns (..., dim_out)."""
    w1, b1, w2, b2, w3, b3 = params
    dim_in = x.shape[-1]
    dim_hidden = w1.shape[1]
    dim_out = w3.shape[1]

    lead_shape = x.shape[:-1]
    n = 1
    for s in lead_shape:
        n *= s

    # Batch-on-lanes orientation (tiny host-side transposes, ~n*(dim_in+dim_out+1) elems).
    xT = x.reshape(n, dim_in).T                                          # (dim_in, N)
    llT = (jnp.broadcast_to(log_lambda, lead_shape + (1,))
           .reshape(n, 1).T.astype(jnp.float32))                        # (1, N)

    # Grid-invariant params: pre-transpose, pre-cast (hoisted out of the kernel body).
    w1xT = w1[:dim_in].T.astype(jnp.bfloat16)                            # (H, dim_in)
    w1lT = w1[dim_in:dim_in + 1].T.astype(jnp.float32)                   # (H, 1)
    b1T = b1.reshape(1, dim_hidden).T.astype(jnp.float32)                # (H, 1)
    w2T = w2.T.astype(jnp.bfloat16)                                      # (H, H)
    b2T = b2.reshape(1, dim_hidden).T.astype(jnp.float32)                # (H, 1)
    w3T = w3.T.astype(jnp.bfloat16)                                      # (dim_out, H)
    b3T = b3.reshape(1, dim_out).T.astype(jnp.float32)                   # (dim_out, 1)

    tb = _pick_tile(n, tile_b)
    grid = (pl.cdiv(n, tb),)                                             # masked partial last block

    full = lambda a: pl.BlockSpec(a.shape, lambda i: (0,) * a.ndim)      # VMEM-resident params

    outT = pl.pallas_call(
        _scorenet_kernel,
        out_shape=jax.ShapeDtypeStruct((dim_out, n), x.dtype),
        grid_spec=pltpu.PrefetchScalarGridSpec(
            num_scalar_prefetch=0,
            grid=grid,
            in_specs=[
                pl.BlockSpec((dim_in, tb), lambda i: (0, i)),            # x lane tile
                pl.BlockSpec((1, tb), lambda i: (0, i)),                 # log_lambda row tile
                full(w1xT), full(w1lT), full(b1T),                       # layer 1 params
                full(w2T), full(b2T),                                    # layer 2 params
                full(w3T), full(b3T),                                    # layer 3 params
            ],
            out_specs=pl.BlockSpec((dim_out, tb), lambda i: (0, i)),
        ),
        compiler_params=pltpu.CompilerParams(
            dimension_semantics=("parallel",),          # lane tiles shard across v7x's 2 TCs
            vmem_limit_bytes=32 * 1024 * 1024,          # explicit cap; fits v7x scoped VMEM
        ),
    )(xT, llT, w1xT, w1lT, b1T, w2T, b2T, w3T, b3T)

    return outT.T.reshape(*lead_shape, dim_out)


# ------------------------------ references ---------------------------------- #
def init_scorenet_params(key, dim_in, dim_hidden=32, dim_out=None, dtype=jnp.float32):
    """Deterministic init mimicking nn.Linear default (uniform +/- 1/sqrt(fan_in))."""
    dim_out = dim_out or dim_in
    dims = [(dim_in + 1, dim_hidden), (dim_hidden, dim_hidden), (dim_hidden, dim_out)]
    params = []
    for fan_in, fan_out in dims:
        key, kw, kb = jax.random.split(key, 3)
        bound = 1.0 / (fan_in ** 0.5)
        w = jax.random.uniform(kw, (fan_in, fan_out), dtype, -bound, bound)
        b = jax.random.uniform(kb, (1, fan_out), dtype, -bound, bound)
        params += [w, b]
    return tuple(params)


def scorenet_ref(x, log_lambda, params, *, matmul_dtype=jnp.float32):
    """Pure-JAX reference of the PyTorch forward (optionally with bf16 matmul operands)."""
    w1, b1, w2, b2, w3, b3 = params
    dim_in = x.shape[-1]
    ll = jnp.broadcast_to(log_lambda, x[..., :1].shape).astype(jnp.float32)
    w1x, w1l = w1[:dim_in], w1[dim_in:dim_in + 1]
    z1 = (jnp.dot(x.astype(matmul_dtype), w1x.astype(matmul_dtype),
                  preferred_element_type=jnp.float32) + ll * w1l + b1)
    a1 = z1 * jax.nn.sigmoid(z1)
    z2 = (jnp.dot(a1.astype(matmul_dtype), w2.astype(matmul_dtype),
                  preferred_element_type=jnp.float32) + b2)
    a2 = z2 * jax.nn.sigmoid(z2)
    z3 = (jnp.dot(a2.astype(matmul_dtype), w3.astype(matmul_dtype),
                  preferred_element_type=jnp.float32) + b3)
    return z3.astype(x.dtype)


if __name__ == "__main__":
    key = jax.random.PRNGKey(0)
    kx, kl, kp, kx2, kl2, kx3, kl3 = jax.random.split(key, 7)

    batch, dim_in, dim_hidden = 16, 8, 32
    params = init_scorenet_params(kp, dim_in, dim_hidden=dim_hidden)

    def check(x, ll, tag):
        out = jax.block_until_ready(scorenet_forward(x, ll, params))
        assert out.shape == x.shape[:-1] + (dim_in,), (tag, out.shape)
        ref_bf16 = scorenet_ref(x, ll, params, matmul_dtype=jnp.bfloat16)
        ref_f32 = scorenet_ref(x, ll, params, matmul_dtype=jnp.float32)
        assert jnp.allclose(out, ref_bf16, atol=2e-3, rtol=2e-3), f"{tag}: mismatch vs bf16 reference"
        assert jnp.allclose(out, ref_f32, atol=1e-1, rtol=1e-1), f"{tag}: mismatch vs f32 reference"

    # Small batch (typical module usage): single VMEM-resident lane block, grid=(1,).
    check(jax.random.normal(kx, (batch, dim_in), jnp.float32),
          jax.random.normal(kl, (batch, 1), jnp.float32), "small")

    # Moderate, non-divisible batch: split into 2 parallel lane tiles (both v7x TCs)
    # with a masked partial last block -- no host pad/concat.
    check(jax.random.normal(kx2, (4103, dim_in), jnp.float32),
          jax.random.normal(kl2, (4103, 1), jnp.float32), "mid")

    # Large batch: capped 8192-lane tiles, multi-step pipelined grid + partial last block.
    check(jax.random.normal(kx3, (17001, dim_in), jnp.float32),
          jax.random.normal(kl3, (17001, 1), jnp.float32), "large")

    print("KERNEL_OK")
</pallas_src>

<mosaic_0001>
module attributes {stable_mosaic.version = 11 : i64} {
  func.func @_scorenet_kernel(%arg0: i32, %arg1: memref<8x16xf32, #tpu.memory_space<vmem>>, %arg2: memref<1x16xf32, #tpu.memory_space<vmem>>, %arg3: memref<32x8xbf16, #tpu.memory_space<vmem>>, %arg4: memref<32x1xf32, #tpu.memory_space<vmem>>, %arg5: memref<32x1xf32, #tpu.memory_space<vmem>>, %arg6: memref<32x32xbf16, #tpu.memory_space<vmem>>, %arg7: memref<32x1xf32, #tpu.memory_space<vmem>>, %arg8: memref<8x32xbf16, #tpu.memory_space<vmem>>, %arg9: memref<8x1xf32, #tpu.memory_space<vmem>>, %arg10: memref<8x16xf32, #tpu.memory_space<vmem>>) attributes {dimension_semantics = [#tpu.dimension_semantics<parallel>], iteration_bounds = array<i64: 1>, scalar_prefetch = 0 : i64, scratch_operands = 0 : i64, tpu.core_type = #tpu.core_type<tc>, window_params = [{transform_indices = @transform_0, window_bounds = array<i64: 8, 16>}, {transform_indices = @transform_1, window_bounds = array<i64: 1, 16>}, {pipeline_mode = #tpu.pipeline_mode<synchronous>, transform_indices = @transform_2, window_bounds = array<i64: 32, 8>}, {pipeline_mode = #tpu.pipeline_mode<synchronous>, transform_indices = @transform_3, window_bounds = array<i64: 32, 1>}, {pipeline_mode = #tpu.pipeline_mode<synchronous>, transform_indices = @transform_4, window_bounds = array<i64: 32, 1>}, {pipeline_mode = #tpu.pipeline_mode<synchronous>, transform_indices = @transform_5, window_bounds = array<i64: 32, 32>}, {pipeline_mode = #tpu.pipeline_mode<synchronous>, transform_indices = @transform_6, window_bounds = array<i64: 32, 1>}, {pipeline_mode = #tpu.pipeline_mode<synchronous>, transform_indices = @transform_7, window_bounds = array<i64: 8, 32>}, {pipeline_mode = #tpu.pipeline_mode<synchronous>, transform_indices = @transform_8, window_bounds = array<i64: 8, 1>}, {transform_indices = @transform_9, window_bounds = array<i64: 8, 16>}]} {
    %c0 = arith.constant 0 : index
    %c0_0 = arith.constant 0 : index
    %0 = vector.load %arg1[%c0, %c0_0] : memref<8x16xf32, #tpu.memory_space<vmem>>, vector<8x16xf32>
    %1 = arith.truncf %0 : vector<8x16xf32> to vector<8x16xbf16>
    %c0_1 = arith.constant 0 : index
    %c0_2 = arith.constant 0 : index
    %2 = vector.load %arg2[%c0_1, %c0_2] : memref<1x16xf32, #tpu.memory_space<vmem>>, vector<1x16xf32>
    %c0_3 = arith.constant 0 : index
    %c0_4 = arith.constant 0 : index
    %3 = vector.load %arg3[%c0_3, %c0_4] : memref<32x8xbf16, #tpu.memory_space<vmem>>, vector<32x8xbf16>
    %cst = arith.constant dense<0.000000e+00> : vector<32x16xf32>
    %4 = tpu.matmul %3, %1, %cst {dimension_numbers = #tpu.dot_dimension_numbers<[1], [0], [0], [1], [0, 0, 1, 1], [], []>} : vector<32x8xbf16>, vector<8x16xbf16>, vector<32x16xf32> -> vector<32x16xf32>
    %c0_5 = arith.constant 0 : index
    %c0_6 = arith.constant 0 : index
    %5 = vector.load %arg4[%c0_5, %c0_6] : memref<32x1xf32, #tpu.memory_space<vmem>>, vector<32x1xf32>
    %6 = vector.broadcast %5 : vector<32x1xf32> to vector<32x16xf32>
    %7 = vector.broadcast %2 : vector<1x16xf32> to vector<32x16xf32>
    %8 = arith.mulf %6, %7 : vector<32x16xf32>
    %9 = arith.addf %4, %8 : vector<32x16xf32>
    %c0_7 = arith.constant 0 : index
    %c0_8 = arith.constant 0 : index
    %10 = vector.load %arg5[%c0_7, %c0_8] : memref<32x1xf32, #tpu.memory_space<vmem>>, vector<32x1xf32>
    %11 = vector.broadcast %10 : vector<32x1xf32> to vector<32x16xf32>
    %12 = arith.addf %9, %11 : vector<32x16xf32>
    %13 = arith.negf %12 : vector<32x16xf32>
    %14 = math.exp %13 : vector<32x16xf32>
    %cst_9 = arith.constant 1.000000e+00 : f32
    %15 = vector.broadcast %cst_9 : f32 to vector<32x16xf32>
    %16 = arith.addf %15, %14 : vector<32x16xf32>
    %17 = arith.divf %15, %16 : vector<32x16xf32>
    %18 = arith.mulf %12, %17 : vector<32x16xf32>
    %19 = arith.truncf %18 : vector<32x16xf32> to vector<32x16xbf16>
    %c0_10 = arith.constant 0 : index
    %c0_11 = arith.constant 0 : index
    %20 = vector.load %arg6[%c0_10, %c0_11] : memref<32x32xbf16, #tpu.memory_space<vmem>>, vector<32x32xbf16>
    %cst_12 = arith.constant dense<0.000000e+00> : vector<32x16xf32>
    %21 = tpu.matmul %20, %19, %cst_12 {dimension_numbers = #tpu.dot_dimension_numbers<[1], [0], [0], [1], [0, 0, 1, 1], [], []>} : vector<32x32xbf16>, vector<32x16xbf16>, vector<32x16xf32> -> vector<32x16xf32>
    %c0_13 = arith.constant 0 : index
    %c0_14 = arith.constant 0 : index
    %22 = vector.load %arg7[%c0_13, %c0_14] : memref<32x1xf32, #tpu.memory_space<vmem>>, vector<32x1xf32>
    %23 = vector.broadcast %22 : vector<32x1xf32> to vector<32x16xf32>
    %24 = arith.addf %21, %23 : vector<32x16xf32>
    %25 = arith.negf %24 : vector<32x16xf32>
    %26 = math.exp %25 : vector<32x16xf32>
    %cst_15 = arith.constant 1.000000e+00 : f32
    %27 = vector.broadcast %cst_15 : f32 to vector<32x16xf32>
    %28 = arith.addf %27, %26 : vector<32x16xf32>
    %29 = arith.divf %27, %28 : vector<32x16xf32>
    %30 = arith.mulf %24, %29 : vector<32x16xf32>
    %31 = arith.truncf %30 : vector<32x16xf32> to vector<32x16xbf16>
    %c0_16 = arith.constant 0 : index
    %c0_17 = arith.constant 0 : index
    %32 = vector.load %arg8[%c0_16, %c0_17] : memref<8x32xbf16, #tpu.memory_space<vmem>>, vector<8x32xbf16>
    %cst_18 = arith.constant dense<0.000000e+00> : vector<8x16xf32>
    %33 = tpu.matmul %32, %31, %cst_18 {dimension_numbers = #tpu.dot_dimension_numbers<[1], [0], [0], [1], [0, 0, 1, 1], [], []>} : vector<8x32xbf16>, vector<32x16xbf16>, vector<8x16xf32> -> vector<8x16xf32>
    %c0_19 = arith.constant 0 : index
    %c0_20 = arith.constant 0 : index
    %34 = vector.load %arg9[%c0_19, %c0_20] : memref<8x1xf32, #tpu.memory_space<vmem>>, vector<8x1xf32>
    %35 = vector.broadcast %34 : vector<8x1xf32> to vector<8x16xf32>
    %36 = arith.addf %33, %35 : vector<8x16xf32>
    %c0_21 = arith.constant 0 : index
    %c0_22 = arith.constant 0 : index
    %37 = vector.load %arg10[%c0_21, %c0_22] : memref<8x16xf32, #tpu.memory_space<vmem>>, vector<8x16xf32>
    tpu.vector_store %arg10[%c0_21, %c0_22], %36 {strides = array<i32>} : memref<8x16xf32, #tpu.memory_space<vmem>>, vector<8x16xf32>,
    return
  }
  func.func @transform_0(%arg0: i32) -> (i32, i32) {
    %c0_i32 = arith.constant 0 : i32
    %c0_i32_0 = arith.constant 0 : i32
    return %c0_i32, %arg0 : i32, i32
  }
  func.func @transform_1(%arg0: i32) -> (i32, i32) {
    %c0_i32 = arith.constant 0 : i32
    %c0_i32_0 = arith.constant 0 : i32
    return %c0_i32, %arg0 : i32, i32
  }
  func.func @transform_2(%arg0: i32) -> (i32, i32) {
    %c0_i32 = arith.constant 0 : i32
    %c0_i32_0 = arith.constant 0 : i32
    %c0_i32_1 = arith.constant 0 : i32
    return %c0_i32, %c0_i32_0 : i32, i32
  }
  func.func @transform_3(%arg0: i32) -> (i32, i32) {
    %c0_i32 = arith.constant 0 : i32
    %c0_i32_0 = arith.constant 0 : i32
    %c0_i32_1 = arith.constant 0 : i32
    return %c0_i32, %c0_i32_0 : i32, i32
  }
  func.func @transform_4(%arg0: i32) -> (i32, i32) {
    %c0_i32 = arith.constant 0 : i32
    %c0_i32_0 = arith.constant 0 : i32
    %c0_i32_1 = arith.constant 0 : i32
    return %c0_i32, %c0_i32_0 : i32, i32
  }
  func.func @transform_5(%arg0: i32) -> (i32, i32) {
    %c0_i32 = arith.constant 0 : i32
    %c0_i32_0 = arith.constant 0 : i32
    %c0_i32_1 = arith.constant 0 : i32
    return %c0_i32, %c0_i32_0 : i32, i32
  }
  func.func @transform_6(%arg0: i32) -> (i32, i32) {
    %c0_i32 = arith.constant 0 : i32
    %c0_i32_0 = arith.constant 0 : i32
    %c0_i32_1 = arith.constant 0 : i32
    return %c0_i32, %c0_i32_0 : i32, i32
  }
  func.func @transform_7(%arg0: i32) -> (i32, i32) {
    %c0_i32 = arith.constant 0 : i32
    %c0_i32_0 = arith.constant 0 : i32
    %c0_i32_1 = arith.constant 0 : i32
    return %c0_i32, %c0_i32_0 : i32, i32
  }
  func.func @transform_8(%arg0: i32) -> (i32, i32) {
    %c0_i32 = arith.constant 0 : i32
    %c0_i32_0 = arith.constant 0 : i32
    %c0_i32_1 = arith.constant 0 : i32
    return %c0_i32, %c0_i32_0 : i32, i32
  }
  func.func @transform_9(%arg0: i32) -> (i32, i32) {
    %c0_i32 = arith.constant 0 : i32
    %c0_i32_0 = arith.constant 0 : i32
    return %c0_i32, %arg0 : i32, i32
  }
}

</mosaic_0001>

<llo_original>
// kernel: tpu_custom_call.1
$region0: #{tpu_custom_call.1}
  #allocation0 [shape = 'u32[]', space=smem, size = 0x4, offset = 0x4, fixed_abs, tag = 'smem constant byte address 0x4 - core index']
  #allocation1 [shape = 'u32[144,128]{1,0:T(1,128)}', space=vmem, size = 0x12000, scoped, tag = 'internal scratch']
  %s0 = inlined_call_operand.vmem [shape: f32[8,16], index: 0, kind: input, shape index: {}]
  %s1 = inlined_call_operand.vmem [shape: f32[1,16], index: 1, kind: input, shape index: {}]
  %s2 = inlined_call_operand.vmem [shape: bf16[32,8], index: 2, kind: input, shape index: {}]
  %s3 = inlined_call_operand.vmem [shape: f32[32,1], index: 3, kind: input, shape index: {}]
  %s4 = inlined_call_operand.vmem [shape: f32[32,1], index: 4, kind: input, shape index: {}]
  %s5 = inlined_call_operand.vmem [shape: bf16[32,32], index: 5, kind: input, shape index: {}]
  %s6 = inlined_call_operand.vmem [shape: f32[32,1], index: 6, kind: input, shape index: {}]
  %s7 = inlined_call_operand.vmem [shape: bf16[8,32], index: 7, kind: input, shape index: {}]
  %s8 = inlined_call_operand.vmem [shape: f32[8,1], index: 8, kind: input, shape index: {}]
  %s9 = inlined_call_operand.hbm [shape: f32[8,16], index: 9, kind: output, shape index: {}]
  %s10 = sld [smem:[#allocation0]]
  $region46: #{tpu_custom_call.1} parent=0
    _
  %s12 = ssub.s32 1, %s10
  %s13 = scalar_select 0, %s12, %s10
  $region1: #{tpu_custom_call.1} parent=0
    #allocation2 [shape = 'u8[4096]{0}', space=vmem, size = 0x1000, scoped, tag = 'output window, operand 0, single buffered']
    #allocation3 [shape = 's32[1]{0}', space=sflag, size = 0x4, scoped, tag = 'scoped memory for tpu_custom_call.1']
    %14 = vsyncpa [#allocation3], 0
    // Predicated region
    $region2: #{tpu_custom_call.1} parent=1 // pred_check
      _
    $region3: #{tpu_custom_call.1} parent=1 // pred_check_branch
      %16 = sbr.rel (0) target = $region5
    $region4: #{tpu_custom_call.1} parent=1 // pred_region
      _
    $region5: #{tpu_custom_call.1} parent=1 // pred_fallthru
      _
    // Predicated region
    $region6: #{tpu_custom_call.1} parent=1 // pred_check
      _
    $region7: #{tpu_custom_call.1} parent=1 // pred_check_branch
      %18 = sbr.rel (0) target = $region9
    $region8: #{tpu_custom_call.1} parent=1 // pred_region
      _
    $region9: #{tpu_custom_call.1} parent=1 // pred_fallthru
      _
    // Predicated region
    $region10: #{tpu_custom_call.1} parent=1 // pred_check
      _
    $region11: #{tpu_custom_call.1} parent=1 // pred_check_branch
      %20 = sbr.rel (0) target = $region13
    $region12: #{tpu_custom_call.1} parent=1 // pred_region
      _
    $region13: #{tpu_custom_call.1} parent=1 // pred_fallthru
      _
    // Predicated region
    $region14: #{tpu_custom_call.1} parent=1 // pred_check
      _
    $region15: #{tpu_custom_call.1} parent=1 // pred_check_branch
      %22 = sbr.rel (0) target = $region17
    $region16: #{tpu_custom_call.1} parent=1 // pred_region
      _
    $region17: #{tpu_custom_call.1} parent=1 // pred_fallthru
      _
    // Predicated region
    $region18: #{tpu_custom_call.1} parent=1 // pred_check
      _
    $region19: #{tpu_custom_call.1} parent=1 // pred_check_branch
      %24 = sbr.rel (0) target = $region21
    $region20: #{tpu_custom_call.1} parent=1 // pred_region
      _
    $region21: #{tpu_custom_call.1} parent=1 // pred_fallthru
      _
    // Predicated region
    $region22: #{tpu_custom_call.1} parent=1 // pred_check
      _
    $region23: #{tpu_custom_call.1} parent=1 // pred_check_branch
      %26 = sbr.rel (0) target = $region25
    $region24: #{tpu_custom_call.1} parent=1 // pred_region
      _
    $region25: #{tpu_custom_call.1} parent=1 // pred_fallthru
      _
    // Predicated region
    $region26: #{tpu_custom_call.1} parent=1 // pred_check
      _
    $region27: #{tpu_custom_call.1} parent=1 // pred_check_branch
      %28 = sbr.rel (0) target = $region29
    $region28: #{tpu_custom_call.1} parent=1 // pred_region
      _
    $region29: #{tpu_custom_call.1} parent=1 // pred_fallthru
      _
    // Predicated region
    $region30: #{tpu_custom_call.1} parent=1 // pred_check
      _
    $region31: #{tpu_custom_call.1} parent=1 // pred_check_branch
      %30 = sbr.rel (0) target = $region33
    $region32: #{tpu_custom_call.1} parent=1 // pred_region
      _
    $region33: #{tpu_custom_call.1} parent=1 // pred_fallthru
      _
    // Predicated region
    $region34: #{tpu_custom_call.1} parent=1 // pred_check
      _
    $region35: #{tpu_custom_call.1} parent=1 // pred_check_branch
      %32 = sbr.rel (0) target = $region37
    $region36: #{tpu_custom_call.1} parent=1 // pred_region
      _
    $region37: #{tpu_custom_call.1} parent=1 // pred_fallthru
      _
    %v34 = vld [vmem:[%s0] sm:$0xff]
    %v35 = vpack.c.bf16 %v34, %v34
    %v36 = vld [vmem:[%s1] sm:$0x1]
    %v37 = vld [vmem:[%s2] sm:$0xf]
    %v38 = vld [vmem:[%s2 + $0x4] sm:$0xf]
    %v39 = vld [vmem:[%s2 + $0x8] sm:$0xf]
    %v40 = vld [vmem:[%s2 + $0xc] sm:$0xf]
    %v41 = vld [vmem:[%s3] sm:$0xff]
    %v42 = vld [vmem:[%s3 + $0x8] sm:$0xff]
    %v43 = vld [vmem:[%s3 + $0x10] sm:$0xff]
    %v44 = vld [vmem:[%s3 + $0x18] sm:$0xff]
    %46 = vset.pattern.permute.xlu0 0
    %47 = vperm.xlu0 %46, %v41
    %v48 = vpop.permute.xlu0 %47
    %51 = vset.pattern.permute.xlu0 0
    %52 = vperm.xlu0 %51, %v42
    %v53 = vpop.permute.xlu0 %52
    %56 = vset.pattern.permute.xlu0 0
    %57 = vperm.xlu0 %56, %v43
    %v58 = vpop.permute.xlu0 %57
    %61 = vset.pattern.permute.xlu0 0
    %62 = vperm.xlu0 %61, %v44
    %v63 = vpop.permute.xlu0 %62
    %v66 = vlaneseq
    %v67 = vshrl.u32 %v66, 7
    %v68 = vsub.s32 0, %v67
    %v69 = vrot.slane %v36, %v68
    %v71 = vmul.f32 %v48, %v69
    %v72 = vmul.f32 %v53, %v69
    %v73 = vmul.f32 %v58, %v69
    %v74 = vmul.f32 %v63, %v69
    %v79 = vunpack.c.l.b16 %v37
    %v80 = vunpack.c.l.b16 %v38
    %v81 = vunpack.c.l.b16 %v39
    %v82 = vunpack.c.l.b16 %v40
    %v83 = vpack.c.b16 %v80, %v79
    %v84 = vpack.c.b16 %v82, %v81
    %vm85 = vcmask 64512
    %v87 = vsel %vm85, %v83, 0
    %v90 = vsel %vm85, %v84, 0
    %vm92 = vcmask 1043456
    %v94 = vsel %vm92, %v35, 0
    %96 = vmatprep.subr.bf16.mxu0 0
    %97 = vmatpush1.bf16.msra.mxu0 %v94
    %98 = vmatprep.subr.bf16.mxu0 0
    %99 = vmatpush1.bf16.msra.mxu0 0
    %100 = vmatprep.subr.bf16.mxu0 0
    %101 = vmatpush1.bf16.msra.mxu0 0
    %102 = vmatprep.subr.bf16.mxu0 0
    %103 = vmatpush1.bf16.msra.mxu0 0
    %104 = vmatprep.subr.bf16.mxu0 0
    %105 = vmatpush1.bf16.msra.mxu0 0
    %106 = vmatprep.subr.bf16.mxu0 0
    %107 = vmatpush1.bf16.msra.mxu0 0
    %108 = vmatprep.subr.bf16.mxu0 0
    %109 = vmatpush1.bf16.msra.mxu0 0
    %110 = vmatprep.subr.bf16.mxu0 0
    %111 = vmatpush1.bf16.msra.mxu0 0
    %112 = vmatprep.subr.bf16.mxu0 0
    %113 = vmatpush1.bf16.msra.mxu0 0
    %114 = vmatprep.subr.bf16.mxu0 0
    %115 = vmatpush1.bf16.msra.mxu0 0
    %116 = vmatprep.subr.bf16.mxu0 0
    %117 = vmatpush1.bf16.msra.mxu0 0
    %118 = vmatprep.subr.bf16.mxu0 0
    %119 = vmatpush1.bf16.msra.mxu0 0
    %120 = vmatprep.subr.bf16.mxu0 0
    %121 = vmatpush1.bf16.msra.mxu0 0
    %122 = vmatprep.subr.bf16.mxu0 0
    %123 = vmatpush1.bf16.msra.mxu0 0
    %124 = vmatprep.subr.bf16.mxu0 0
    %125 = vmatpush1.bf16.msra.mxu0 0
    %126 = vmatprep.subr.bf16.mxu0 0
    %127 = vmatpush1.bf16.msra.mxu0 0
    %128 = vmatprep.mubr.bf16.mxu0 0
    %129 = vmatmul.mubr.bf16.gmra.mrb[0].mxu0 %v87
    %v130 = vpop.f32.mrb[0].mxu0
    %v131 = vadd.f32 %v71, %v130
    %v132 = vpop.f32.mrb[0].mxu0
    %v133 = vpop.f32.mrb[0].mxu0
    %v134 = vadd.f32 %v72, %v133
    %v135 = vpop.f32.mrb[0].mxu0
    %136 = vmatprep.mubr.bf16.mxu0 0
    %137 = vmatmul.mubr.bf16.gmra.mrb[0].mxu0 %v90
    %v138 = vpop.f32.mrb[0].mxu0
    %v139 = vadd.f32 %v73, %v138
    %v140 = vpop.f32.mrb[0].mxu0
    %v141 = vpop.f32.mrb[0].mxu0
    %v142 = vadd.f32 %v74, %v141
    %v143 = vpop.f32.mrb[0].mxu0
    %144 = vdwg.mxu0
    %v145 = vld [vmem:[%s4] sm:$0xff]
    %v146 = vld [vmem:[%s4 + $0x8] sm:$0xff]
    %v147 = vld [vmem:[%s4 + $0x10] sm:$0xff]
    %v148 = vld [vmem:[%s4 + $0x18] sm:$0xff]
    %150 = vset.pattern.permute.xlu0 0
    %151 = vperm.xlu0 %150, %v145
    %v152 = vpop.permute.xlu0 %151
    %155 = vset.pattern.permute.xlu0 0
    %156 = vperm.xlu0 %155, %v146
    %v157 = vpop.permute.xlu0 %156
    %160 = vset.pattern.permute.xlu0 0
    %161 = vperm.xlu0 %160, %v147
    %v162 = vpop.permute.xlu0 %161
    %165 = vset.pattern.permute.xlu0 0
    %166 = vperm.xlu0 %165, %v148
    %v167 = vpop.permute.xlu0 %166
    %v169 = vadd.f32 %v131, %v152
    %v170 = vadd.f32 %v134, %v157
    %v171 = vadd.f32 %v139, %v162
    %v172 = vadd.f32 %v142, %v167
    %v173 = vxor.u32 %v169, 2147483648
    %v174 = vxor.u32 %v170, 2147483648
    %v175 = vxor.u32 %v171, 2147483648
    %v176 = vxor.u32 %v172, 2147483648
    %v177 = vmul.f32 %v173, 1.442695
    %v178 = vpow.pop %v177
    %v179 = vmul.f32 %v174, 1.442695
    %v180 = vpow.pop %v179
    %v181 = vmul.f32 %v175, 1.442695
    %v182 = vpow.pop %v181
    %v183 = vmul.f32 %v176, 1.442695
    %v184 = vpow.pop %v183
    %v185 = vadd.f32 %v178, 1.0
    %v186 = vadd.f32 %v180, 1.0
    %v187 = vadd.f32 %v182, 1.0
    %v188 = vadd.f32 %v184, 1.0
    %v189 = vrcp.pop %v185
    %v190 = vmul.f32 1.0, %v189
    %v191 = vrcp.pop %v186
    %v192 = vmul.f32 1.0, %v191
    %v193 = vrcp.pop %v187
    %v194 = vmul.f32 1.0, %v193
    %v195 = vrcp.pop %v188
    %v196 = vmul.f32 1.0, %v195
    %v197 = vmul.f32 %v169, %v190
    %v198 = vmul.f32 %v170, %v192
    %v199 = vmul.f32 %v171, %v194
    %v200 = vmul.f32 %v172, %v196
    %v201 = vpack.c.bf16 %v198, %v197
    %v202 = vpack.c.bf16 %v200, %v199
    %v203 = vld [vmem:[%s5] sm:$0xf]
    %v204 = vld [vmem:[%s5 + $0x4] sm:$0xf]
    %v205 = vld [vmem:[%s5 + $0x8] sm:$0xf]
    %v206 = vld [vmem:[%s5 + $0xc] sm:$0xf]
    %v207 = vld [vmem:[%s6] sm:$0xff]
    %v208 = vld [vmem:[%s6 + $0x8] sm:$0xff]
    %v209 = vld [vmem:[%s6 + $0x10] sm:$0xff]
    %v210 = vld [vmem:[%s6 + $0x18] sm:$0xff]
    %212 = vset.pattern.permute.xlu0 0
    %213 = vperm.xlu0 %212, %v207
    %v214 = vpop.permute.xlu0 %213
    %217 = vset.pattern.permute.xlu0 0
    %218 = vperm.xlu0 %217, %v208
    %v219 = vpop.permute.xlu0 %218
    %222 = vset.pattern.permute.xlu0 0
    %223 = vperm.xlu0 %222, %v209
    %v224 = vpop.permute.xlu0 %223
    %227 = vset.pattern.permute.xlu0 0
    %228 = vperm.xlu0 %227, %v210
    %v229 = vpop.permute.xlu0 %228
    %v235 = vunpack.c.l.b16 %v203
    %v236 = vunpack.c.l.b16 %v204
    %v237 = vunpack.c.l.b16 %v205
    %v238 = vunpack.c.l.b16 %v206
    %v239 = vpack.c.b16 %v236, %v235
    %v240 = vpack.c.b16 %v238, %v237
    %vm241 = vcmask 261120
    %v243 = vsel %vm241, %v239, 0
    %v246 = vsel %vm241, %v240, 0
    %248 = vmatprep.subr.bf16.mxu0 0
    %249 = vmatpush1.bf16.msra.mxu0 %v201
    %250 = vmatprep.subr.bf16.mxu0 0
    %251 = vmatpush1.bf16.msra.mxu0 %v202
    %252 = vmatprep.subr.bf16.mxu0 0
    %253 = vmatpush1.bf16.msra.mxu0 0
    %254 = vmatprep.subr.bf16.mxu0 0
    %255 = vmatpush1.bf16.msra.mxu0 0
    %256 = vmatprep.subr.bf16.mxu0 0
    %257 = vmatpush1.bf16.msra.mxu0 0
    %258 = vmatprep.subr.bf16.mxu0 0
    %259 = vmatpush1.bf16.msra.mxu0 0
    %260 = vmatprep.subr.bf16.mxu0 0
    %261 = vmatpush1.bf16.msra.mxu0 0
    %262 = vmatprep.subr.bf16.mxu0 0
    %263 = vmatpush1.bf16.msra.mxu0 0
    %264 = vmatprep.subr.bf16.mxu0 0
    %265 = vmatpush1.bf16.msra.mxu0 0
    %266 = vmatprep.subr.bf16.mxu0 0
    %267 = vmatpush1.bf16.msra.mxu0 0
    %268 = vmatprep.subr.bf16.mxu0 0
    %269 = vmatpush1.bf16.msra.mxu0 0
    %270 = vmatprep.subr.bf16.mxu0 0
    %271 = vmatpush1.bf16.msra.mxu0 0
    %272 = vmatprep.subr.bf16.mxu0 0
    %273 = vmatpush1.bf16.msra.mxu0 0
    %274 = vmatprep.subr.bf16.mxu0 0
    %275 = vmatpush1.bf16.msra.mxu0 0
    %276 = vmatprep.subr.bf16.mxu0 0
    %277 = vmatpush1.bf16.msra.mxu0 0
    %278 = vmatprep.subr.bf16.mxu0 0
    %279 = vmatpush1.bf16.msra.mxu0 0
    %280 = vmatprep.mubr.bf16.mxu0 0
    %281 = vmatmul.mubr.bf16.gmra.mrb[0].mxu0 %v243
    %v282 = vpop.f32.mrb[0].mxu0
    %v283 = vadd.f32 %v214, %v282
    %v284 = vpop.f32.mrb[0].mxu0
    %v285 = vpop.f32.mrb[0].mxu0
    %v286 = vadd.f32 %v219, %v285
    %v287 = vpop.f32.mrb[0].mxu0
    %288 = vmatprep.mubr.bf16.mxu0 0
    %289 = vmatmul.mubr.bf16.gmra.mrb[0].mxu0 %v246
    %v290 = vpop.f32.mrb[0].mxu0
    %v291 = vadd.f32 %v224, %v290
    %v292 = vpop.f32.mrb[0].mxu0
    %v293 = vpop.f32.mrb[0].mxu0
    %v294 = vadd.f32 %v229, %v293
    %v295 = vpop.f32.mrb[0].mxu0
    %296 = vdwg.mxu0
    %v297 = vxor.u32 %v283, 2147483648
    %v298 = vxor.u32 %v286, 2147483648
    %v299 = vxor.u32 %v291, 2147483648
    %v300 = vxor.u32 %v294, 2147483648
    %v301 = vmul.f32 %v297, 1.442695
    %v302 = vpow.pop %v301
    %v303 = vmul.f32 %v298, 1.442695
    %v304 = vpow.pop %v303
    %v305 = vmul.f32 %v299, 1.442695
    %v306 = vpow.pop %v305
    %v307 = vmul.f32 %v300, 1.442695
    %v308 = vpow.pop %v307
    %v309 = vadd.f32 %v302, 1.0
    %v310 = vadd.f32 %v304, 1.0
    %v311 = vadd.f32 %v306, 1.0
    %v312 = vadd.f32 %v308, 1.0
    %v313 = vrcp.pop %v309
    %v314 = vmul.f32 1.0, %v313
    %v315 = vrcp.pop %v310
    %v316 = vmul.f32 1.0, %v315
    %v317 = vrcp.pop %v311
    %v318 = vmul.f32 1.0, %v317
    %v319 = vrcp.pop %v312
    %v320 = vmul.f32 1.0, %v319
    %v321 = vmul.f32 %v283, %v314
    %v322 = vmul.f32 %v286, %v316
    %v323 = vmul.f32 %v291, %v318
    %v324 = vmul.f32 %v294, %v320
    %v325 = vpack.c.bf16 %v322, %v321
    %v326 = vpack.c.bf16 %v324, %v323
    %v327 = vld [vmem:[%s7] sm:$0xf]
    %v328 = vld [vmem:[%s8] sm:$0xff]
    %330 = vset.pattern.permute.xlu0 0
    %331 = vperm.xlu0 %330, %v328
    %v332 = vpop.permute.xlu0 %331
    %v335 = vsel %vm241, %v327, 0
    %337 = vmatprep.subr.bf16.mxu0 0
    %338 = vmatpush1.bf16.msra.mxu0 %v325
    %339 = vmatprep.subr.bf16.mxu0 0
    %340 = vmatpush1.bf16.msra.mxu0 %v326
    %341 = vmatprep.subr.bf16.mxu0 0
    %342 = vmatpush1.bf16.msra.mxu0 0
    %343 = vmatprep.subr.bf16.mxu0 0
    %344 = vmatpush1.bf16.msra.mxu0 0
    %345 = vmatprep.subr.bf16.mxu0 0
    %346 = vmatpush1.bf16.msra.mxu0 0
    %347 = vmatprep.subr.bf16.mxu0 0
    %348 = vmatpush1.bf16.msra.mxu0 0
    %349 = vmatprep.subr.bf16.mxu0 0
    %350 = vmatpush1.bf16.msra.mxu0 0
    %351 = vmatprep.subr.bf16.mxu0 0
    %352 = vmatpush1.bf16.msra.mxu0 0
    %353 = vmatprep.subr.bf16.mxu0 0
    %354 = vmatpush1.bf16.msra.mxu0 0
    %355 = vmatprep.subr.bf16.mxu0 0
    %356 = vmatpush1.bf16.msra.mxu0 0
    %357 = vmatprep.subr.bf16.mxu0 0
    %358 = vmatpush1.bf16.msra.mxu0 0
    %359 = vmatprep.subr.bf16.mxu0 0
    %360 = vmatpush1.bf16.msra.mxu0 0
    %361 = vmatprep.subr.bf16.mxu0 0
    %362 = vmatpush1.bf16.msra.mxu0 0
    %363 = vmatprep.subr.bf16.mxu0 0
    %364 = vmatpush1.bf16.msra.mxu0 0
    %365 = vmatprep.subr.bf16.mxu0 0
    %366 = vmatpush1.bf16.msra.mxu0 0
    %367 = vmatprep.subr.bf16.mxu0 0
    %368 = vmatpush1.bf16.msra.mxu0 0
    %369 = vmatprep.mubr.bf16.mxu0 0
    %370 = vmatmul.mubr.bf16.gmra.mrb[0].mxu0 %v335
    %v371 = vpop.f32.mrb[0].mxu0
    %v372 = vadd.f32 %v332, %v371
    %v373 = vpop.f32.mrb[0].mxu0
    %v374 = vpop.f32.mrb[0].mxu0
    %v375 = vpop.f32.mrb[0].mxu0
    %376 = vdwg.mxu0
    %vm377 = vcmask 130048
    %378 = vst.msk [vmem:[#allocation2] sm:$0xff] %vm377, %v372
    // Predicated region
    $region38: #{tpu_custom_call.1} parent=1 // pred_check
      _
    $region39: #{tpu_custom_call.1} parent=1 // pred_check_branch
      %380 = sbr.rel (0) target = $region41
    $region40: #{tpu_custom_call.1} parent=1 // pred_region
      %s382 = ssub.s32 128, 128
      %383 = vsyncadd [#allocation3], %s382
      %s385 = sshll.u32 [#allocation2], 4
      %s386 = int_to_ptr.vmem [resolvable:$true] %s385
      %388 = dma.vmem_to_hbm [thread:$0]  %s386, 128, %s9, [#allocation3]
    $region41: #{tpu_custom_call.1} parent=1 // pred_fallthru
      _
    // Predicated region
    $region42: #{tpu_custom_call.1} parent=1 // pred_check
      _
    $region43: #{tpu_custom_call.1} parent=1 // pred_check_branch
      %390 = sbr.rel (0) target = $region45
    $region44: #{tpu_custom_call.1} parent=1 // pred_region
      %391 = dma.done [#allocation3], 128
    $region45: #{tpu_custom_call.1} parent=1 // pred_fallthru
      _
    %392 = vsyncpa [#allocation3], 1

</llo_original>
